<compile_context>
chip_gen: v6e
topology: v6e:2x2x1
jax: 0.10.0
libtpu: 0.0.40
codegen_flags: <defaults>
</compile_context>

<pallas_src>
import jax
import jax.numpy as jnp
from jax.experimental import pallas as pl
from jax.experimental.pallas import tpu as pltpu

INPUT_SIZE = 768
HIDDEN = 128
OUT_SIZE = 9
OUT_PAD = 128                 # lane-dense padded output width (multiple of 128)
DEFAULT_BLOCK_BATCH = 1024    # rows per grid step (fits comfortably in 32 MiB VMEM)


def _round_up(a, m):
    return (a + m - 1) // m * m


def _pick_tile(batch, block_batch):
    """Batch tile: >=2 grid steps when possible (v7x 2 TCs), MXU/sublane aligned."""
    if batch <= 16:
        return batch                       # single full-dim block (exempt from (8,128) rule)
    half = (batch + 1) // 2                # aim for >= 2 grid steps
    align = 256 if half >= 256 else 16     # 16: bf16-out sublane pack; 256: MXU-friendly
    return min(block_batch, _round_up(half, align))


def simplenn_kernel(x_ref, w1_ref, b1_ref, w2_ref, b2_ref, o_ref):
    eps = 1e-6
    x = x_ref[...]                                   # (TB, 768) f32
    x = jnp.clip(x, eps, 1.0 - eps)                  # torch.clamp(x, 1e-6, 1-1e-6)
    x = jnp.log(x) - jnp.log1p(-x)                   # logit, no divide (f32 EUP)
    # bf16 inputs on the MXU, f32 accumulation.
    h = jnp.dot(x.astype(jnp.bfloat16), w1_ref[...],
                preferred_element_type=jnp.float32) + b1_ref[...]
    h = jnp.maximum(h, 0.0)                          # ReLU
    y = jnp.dot(h.astype(jnp.bfloat16), w2_ref[...],
                preferred_element_type=jnp.float32) + b2_ref[...]
    # Lane-dense (TB, 128) store, bf16 to halve writeback bytes.
    o_ref[...] = jax.nn.sigmoid(y).astype(o_ref.dtype)


def simplenn_forward(x, w1, b1, w2, b2, *, block_batch=DEFAULT_BLOCK_BATCH):
    batch, in_size = x.shape
    hidden = w1.shape[1]
    out_size = w2.shape[1]
    assert out_size <= OUT_PAD

    # Lane-dense padded second layer (zeros in the padded columns -> sliced off).
    w2_p = jnp.zeros((hidden, OUT_PAD), jnp.float32).at[:, :out_size].set(w2)
    b2_p = jnp.zeros((1, OUT_PAD), jnp.float32).at[:, :out_size].set(b2)

    # bf16 weights (dominant HBM traffic for small batch), f32 biases.
    w1_bf = w1.astype(jnp.bfloat16)
    w2_bf = w2_p.astype(jnp.bfloat16)
    b1_row = b1.reshape(1, hidden).astype(jnp.float32)

    # Batch tiling: no wrapper-side x copy; ragged last block handled by the grid
    # (OOB rows are read-garbage / write-dropped; rows are independent).
    tb = _pick_tile(batch, block_batch)
    grid = (pl.cdiv(batch, tb),)

    cost = pl.CostEstimate(
        flops=2 * batch * (in_size * hidden + hidden * OUT_PAD),
        # logit: log + log1p per x element; sigmoid: exp + reciprocal per padded out.
        transcendentals=batch * (2 * in_size + 2 * OUT_PAD),
        bytes_accessed=(x.size * 4 + w1_bf.size * 2 + w2_bf.size * 2
                        + b1_row.size * 4 + b2_p.size * 4
                        + batch * OUT_PAD * 2),
    )

    out_p = pl.pallas_call(
        simplenn_kernel,
        out_shape=jax.ShapeDtypeStruct((batch, OUT_PAD), jnp.bfloat16),
        grid=grid,
        in_specs=[
            pl.BlockSpec((tb, in_size), lambda i: (i, 0)),       # x: streamed per tile
            pl.BlockSpec((in_size, hidden), lambda i: (0, 0)),   # w1: VMEM-resident
            pl.BlockSpec((1, hidden), lambda i: (0, 0)),         # b1: VMEM-resident
            pl.BlockSpec((hidden, OUT_PAD), lambda i: (0, 0)),   # w2: VMEM-resident
            pl.BlockSpec((1, OUT_PAD), lambda i: (0, 0)),        # b2: VMEM-resident
        ],
        out_specs=pl.BlockSpec((tb, OUT_PAD), lambda i: (i, 0)),
        compiler_params=pltpu.CompilerParams(
            dimension_semantics=("parallel",),
            vmem_limit_bytes=32 * 1024 * 1024,   # v5e default (16 MiB) is too tight at tb=1024
        ),
        cost_estimate=cost,
    )(x, w1_bf, b1_row, w2_bf, b2_p)

    return out_p[:, :out_size].astype(jnp.float32)


def init_params(key, input_size=INPUT_SIZE, hidden_units=HIDDEN,
                output_size=OUT_SIZE):
    # PyTorch-style init: U(-1/sqrt(fan_in), 1/sqrt(fan_in)); weights stored
    # (in_features, out_features), i.e. transposed vs nn.Linear.weight.
    k1, k2, k3, k4 = jax.random.split(key, 4)
    bound1 = 1.0 / jnp.sqrt(input_size)
    bound2 = 1.0 / jnp.sqrt(hidden_units)
    w1 = jax.random.uniform(k1, (input_size, hidden_units), jnp.float32,
                            -bound1, bound1)
    b1 = jax.random.uniform(k2, (hidden_units,), jnp.float32, -bound1, bound1)
    w2 = jax.random.uniform(k3, (hidden_units, output_size), jnp.float32,
                            -bound2, bound2)
    b2 = jax.random.uniform(k4, (output_size,), jnp.float32, -bound2, bound2)
    return w1, b1, w2, b2


def reference_forward(x, w1, b1, w2, b2, *, weight_dtype=jnp.float32):
    eps = 1e-6
    xc = jnp.clip(x, eps, 1.0 - eps)
    z = jnp.log(xc) - jnp.log1p(-xc)
    h = jnp.maximum(
        jnp.dot(z.astype(weight_dtype), w1.astype(weight_dtype),
                preferred_element_type=jnp.float32) + b1, 0.0)
    y = jnp.dot(h.astype(weight_dtype), w2.astype(weight_dtype),
                preferred_element_type=jnp.float32) + b2
    return jax.nn.sigmoid(y)


if __name__ == "__main__":
    key = jax.random.PRNGKey(0)
    k_params, k_x = jax.random.split(key)
    batch = 8

    w1, b1, w2, b2 = init_params(k_params)
    # Inputs are probabilities in (0, 1) (the forward applies a logit transform).
    x = jax.random.uniform(k_x, (batch, INPUT_SIZE), jnp.float32, 0.0, 1.0)

    out = jax.block_until_ready(simplenn_forward(x, w1, b1, w2, b2))

    ref_f32 = reference_forward(x, w1, b1, w2, b2)
    ref_bf16 = reference_forward(x, w1, b1, w2, b2, weight_dtype=jnp.bfloat16)

    assert out.shape == (batch, OUT_SIZE)
    # Loose check vs. full-f32 math (bf16 weight + bf16 output quantization)...
    assert jnp.allclose(out, ref_f32, atol=5e-2, rtol=0.0), \
        float(jnp.max(jnp.abs(out - ref_f32)))
    # ...and a tighter check vs. a bf16-weight reference (kernel additionally
    # stores the sigmoid output in bf16, ~4e-3 max quantization error near 1.0).
    assert jnp.allclose(out, ref_bf16, atol=1e-2, rtol=0.0), \
        float(jnp.max(jnp.abs(out - ref_bf16)))
    print("KERNEL_OK")
</pallas_src>

<mosaic_0001>
module attributes {stable_mosaic.version = 11 : i64} {
  func.func @simplenn_kernel(%arg0: i32, %arg1: memref<8x768xf32, #tpu.memory_space<vmem>>, %arg2: memref<768x128xbf16, #tpu.memory_space<vmem>>, %arg3: memref<1x128xf32, #tpu.memory_space<vmem>>, %arg4: memref<128x128xbf16, #tpu.memory_space<vmem>>, %arg5: memref<1x128xf32, #tpu.memory_space<vmem>>, %arg6: memref<8x128xbf16, #tpu.memory_space<vmem>>) attributes {dimension_semantics = [#tpu.dimension_semantics<parallel>], iteration_bounds = array<i64: 1>, scalar_prefetch = 0 : i64, scratch_operands = 0 : i64, tpu.core_type = #tpu.core_type<tc>, window_params = [{transform_indices = @transform_0, window_bounds = array<i64: 8, 768>}, {pipeline_mode = #tpu.pipeline_mode<synchronous>, transform_indices = @transform_1, window_bounds = array<i64: 768, 128>}, {pipeline_mode = #tpu.pipeline_mode<synchronous>, transform_indices = @transform_2, window_bounds = array<i64: 1, 128>}, {pipeline_mode = #tpu.pipeline_mode<synchronous>, transform_indices = @transform_3, window_bounds = array<i64: 128, 128>}, {pipeline_mode = #tpu.pipeline_mode<synchronous>, transform_indices = @transform_4, window_bounds = array<i64: 1, 128>}, {transform_indices = @transform_5, window_bounds = array<i64: 8, 128>}]} {
    %c0 = arith.constant 0 : index
    %c0_0 = arith.constant 0 : index
    %0 = vector.load %arg1[%c0, %c0_0] : memref<8x768xf32, #tpu.memory_space<vmem>>, vector<8x768xf32>
    %cst = arith.constant 9.99999997E-7 : f32
    %cst_1 = arith.constant 0.999998986 : f32
    %1 = vector.broadcast %cst : f32 to vector<8x768xf32>
    %2 = arith.maximumf %1, %0 : vector<8x768xf32>
    %3 = vector.broadcast %cst_1 : f32 to vector<8x768xf32>
    %4 = arith.minimumf %3, %2 : vector<8x768xf32>
    %5 = math.log %4 : vector<8x768xf32>
    %cst_2 = arith.constant 0.000000e+00 : f32
    %6 = vector.broadcast %cst_2 : f32 to vector<8x768xf32>
    %7 = arith.subf %6, %4 : vector<8x768xf32>
    %8 = math.log1p %7 : vector<8x768xf32>
    %9 = arith.subf %5, %8 : vector<8x768xf32>
    %10 = arith.truncf %9 : vector<8x768xf32> to vector<8x768xbf16>
    %c0_3 = arith.constant 0 : index
    %c0_4 = arith.constant 0 : index
    %11 = vector.load %arg2[%c0_3, %c0_4] : memref<768x128xbf16, #tpu.memory_space<vmem>>, vector<768x128xbf16>
    %cst_5 = arith.constant dense<0.000000e+00> : vector<8x128xf32>
    %12 = tpu.matmul %10, %11, %cst_5 {dimension_numbers = #tpu.dot_dimension_numbers<[1], [0], [0], [1], [0, 0, 1, 1], [], []>} : vector<8x768xbf16>, vector<768x128xbf16>, vector<8x128xf32> -> vector<8x128xf32>
    %c0_6 = arith.constant 0 : index
    %c0_7 = arith.constant 0 : index
    %13 = vector.load %arg3[%c0_6, %c0_7] : memref<1x128xf32, #tpu.memory_space<vmem>>, vector<1x128xf32>
    %14 = vector.broadcast %13 : vector<1x128xf32> to vector<8x128xf32>
    %15 = arith.addf %12, %14 : vector<8x128xf32>
    %cst_8 = arith.constant 0.000000e+00 : f32
    %16 = vector.broadcast %cst_8 : f32 to vector<8x128xf32>
    %17 = arith.maximumf %15, %16 : vector<8x128xf32>
    %18 = arith.truncf %17 : vector<8x128xf32> to vector<8x128xbf16>
    %c0_9 = arith.constant 0 : index
    %c0_10 = arith.constant 0 : index
    %19 = vector.load %arg4[%c0_9, %c0_10] : memref<128x128xbf16, #tpu.memory_space<vmem>>, vector<128x128xbf16>
    %cst_11 = arith.constant dense<0.000000e+00> : vector<8x128xf32>
    %20 = tpu.matmul %18, %19, %cst_11 {dimension_numbers = #tpu.dot_dimension_numbers<[1], [0], [0], [1], [0, 0, 1, 1], [], []>} : vector<8x128xbf16>, vector<128x128xbf16>, vector<8x128xf32> -> vector<8x128xf32>
    %c0_12 = arith.constant 0 : index
    %c0_13 = arith.constant 0 : index
    %21 = vector.load %arg5[%c0_12, %c0_13] : memref<1x128xf32, #tpu.memory_space<vmem>>, vector<1x128xf32>
    %22 = vector.broadcast %21 : vector<1x128xf32> to vector<8x128xf32>
    %23 = arith.addf %20, %22 : vector<8x128xf32>
    %24 = arith.negf %23 : vector<8x128xf32>
    %25 = math.exp %24 : vector<8x128xf32>
    %cst_14 = arith.constant 1.000000e+00 : f32
    %26 = vector.broadcast %cst_14 : f32 to vector<8x128xf32>
    %27 = arith.addf %26, %25 : vector<8x128xf32>
    %28 = arith.divf %26, %27 : vector<8x128xf32>
    %29 = arith.truncf %28 : vector<8x128xf32> to vector<8x128xbf16>
    %c0_15 = arith.constant 0 : index
    %c0_16 = arith.constant 0 : index
    %30 = vector.load %arg6[%c0_15, %c0_16] : memref<8x128xbf16, #tpu.memory_space<vmem>>, vector<8x128xbf16>
    tpu.vector_store %arg6[%c0_15, %c0_16], %29 {strides = array<i32>} : memref<8x128xbf16, #tpu.memory_space<vmem>>, vector<8x128xbf16>,
    return
  }
  func.func @transform_0(%arg0: i32) -> (i32, i32) {
    %c0_i32 = arith.constant 0 : i32
    %c0_i32_0 = arith.constant 0 : i32
    return %arg0, %c0_i32 : i32, i32
  }
  func.func @transform_1(%arg0: i32) -> (i32, i32) {
    %c0_i32 = arith.constant 0 : i32
    %c0_i32_0 = arith.constant 0 : i32
    %c0_i32_1 = arith.constant 0 : i32
    return %c0_i32, %c0_i32_0 : i32, i32
  }
  func.func @transform_2(%arg0: i32) -> (i32, i32) {
    %c0_i32 = arith.constant 0 : i32
    %c0_i32_0 = arith.constant 0 : i32
    %c0_i32_1 = arith.constant 0 : i32
    return %c0_i32, %c0_i32_0 : i32, i32
  }
  func.func @transform_3(%arg0: i32) -> (i32, i32) {
    %c0_i32 = arith.constant 0 : i32
    %c0_i32_0 = arith.constant 0 : i32
    %c0_i32_1 = arith.constant 0 : i32
    return %c0_i32, %c0_i32_0 : i32, i32
  }
  func.func @transform_4(%arg0: i32) -> (i32, i32) {
    %c0_i32 = arith.constant 0 : i32
    %c0_i32_0 = arith.constant 0 : i32
    %c0_i32_1 = arith.constant 0 : i32
    return %c0_i32, %c0_i32_0 : i32, i32
  }
  func.func @transform_5(%arg0: i32) -> (i32, i32) {
    %c0_i32 = arith.constant 0 : i32
    %c0_i32_0 = arith.constant 0 : i32
    return %arg0, %c0_i32 : i32, i32
  }
}

</mosaic_0001>

<llo_original>
// kernel: tpu_custom_call.1
$region0: #{tpu_custom_call.1}
  #allocation0 [shape = 'u32[]', space=smem, size = 0x4, offset = 0x4, fixed_abs, tag = 'smem constant byte address 0x4 - core index']
  #allocation1 [shape = 'u32[144,128]{1,0:T(1,128)}', space=vmem, size = 0x12000, scoped, tag = 'internal scratch']
  %s0 = inlined_call_operand.hbm [shape: f32[8,768], index: 0, kind: input, shape index: {}]
  %s1 = inlined_call_operand.hbm [shape: bf16[768,128], index: 1, kind: input, shape index: {}]
  %s2 = inlined_call_operand.vmem [shape: f32[1,128], index: 2, kind: input, shape index: {}]
  %s3 = inlined_call_operand.hbm [shape: bf16[128,128], index: 3, kind: input, shape index: {}]
  %s4 = inlined_call_operand.vmem [shape: f32[1,128], index: 4, kind: input, shape index: {}]
  %s5 = inlined_call_operand.hbm [shape: bf16[8,128], index: 5, kind: output, shape index: {}]
  %s6 = sld [smem:[#allocation0]]
  $region42: #{tpu_custom_call.1} parent=0
    _
  %s8 = ssub.s32 1, %s6
  %s9 = scalar_select 0, %s8, %s6
  $region1: #{tpu_custom_call.1} parent=0
    #allocation2 [shape = 'u8[24576]{0}', space=vmem, size = 0x6000, scoped, tag = 'input window, operand 0, single buffered']
    #allocation3 [shape = 's32[1]{0}', space=sflag, size = 0x4, scoped, tag = 'scoped memory for tpu_custom_call.1']
    #allocation4 [shape = 's32[1]{0}', space=sflag, size = 0x4, scoped, tag = 'scoped memory for tpu_custom_call.1']
    #allocation5 [shape = 'u8[196608]{0}', space=vmem, size = 0x30000, scoped, tag = 'input window, operand 1, single buffered']
    #allocation6 [shape = 's32[1]{0}', space=sflag, size = 0x4, scoped, tag = 'scoped memory for tpu_custom_call.1']
    #allocation7 [shape = 'u8[32768]{0}', space=vmem, size = 0x8000, scoped, tag = 'input window, operand 3, single buffered']
    #allocation8 [shape = 'u8[2048]{0}', space=vmem, size = 0x800, scoped, tag = 'output window, operand 0, single buffered']
    %10 = vsyncpa [#allocation3], 0
    %11 = vsyncpa [#allocation6], 0
    %12 = vsyncpa [#allocation4], 0
    // Predicated region
    $region2: #{tpu_custom_call.1} parent=1 // pred_check
      _
    $region3: #{tpu_custom_call.1} parent=1 // pred_check_branch
      %14 = sbr.rel (0) target = $region5
    $region4: #{tpu_custom_call.1} parent=1 // pred_region
      %s16 = ssub.s32 768, 768
      %17 = vsyncadd [#allocation3], %s16
      %s19 = sshll.u32 [#allocation2], 4
      %s20 = int_to_ptr.vmem [resolvable:$true] %s19
      %22 = dma.hbm_to_vmem [thread:$0]  %s0, 768, %s20, [#allocation3]
    $region5: #{tpu_custom_call.1} parent=1 // pred_fallthru
      _
    // Predicated region
    $region6: #{tpu_custom_call.1} parent=1 // pred_check
      _
    $region7: #{tpu_custom_call.1} parent=1 // pred_check_branch
      %24 = sbr.rel (0) target = $region9
    $region8: #{tpu_custom_call.1} parent=1 // pred_region
      %s26 = ssub.s32 6144, 6144
      %27 = vsyncadd [#allocation6], %s26
      %s28 = sshll.u32 [#allocation5], 4
      %s29 = int_to_ptr.vmem [resolvable:$true] %s28
      %34 = dma.hbm_to_vmem [thread:$0]  %s1, 6144, %s29, [#allocation6], 64, 64, 4
    $region9: #{tpu_custom_call.1} parent=1 // pred_fallthru
      _
    // Predicated region
    $region10: #{tpu_custom_call.1} parent=1 // pred_check
      _
    $region11: #{tpu_custom_call.1} parent=1 // pred_check_branch
      %36 = sbr.rel (0) target = $region13
    $region12: #{tpu_custom_call.1} parent=1 // pred_region
      _
    $region13: #{tpu_custom_call.1} parent=1 // pred_fallthru
      _
    // Predicated region
    $region14: #{tpu_custom_call.1} parent=1 // pred_check
      _
    $region15: #{tpu_custom_call.1} parent=1 // pred_check_branch
      %38 = sbr.rel (0) target = $region17
    $region16: #{tpu_custom_call.1} parent=1 // pred_region
      %s40 = ssub.s32 1024, 1024
      %41 = vsyncadd [#allocation6], %s40
      %s42 = sshll.u32 [#allocation7], 4
      %s43 = int_to_ptr.vmem [resolvable:$true] %s42
      %48 = dma.hbm_to_vmem [thread:$0]  %s3, 1024, %s43, [#allocation6], 64, 64, 4
    $region17: #{tpu_custom_call.1} parent=1 // pred_fallthru
      _
    // Predicated region
    $region18: #{tpu_custom_call.1} parent=1 // pred_check
      _
    $region19: #{tpu_custom_call.1} parent=1 // pred_check_branch
      %50 = sbr.rel (0) target = $region21
    $region20: #{tpu_custom_call.1} parent=1 // pred_region
      _
    $region21: #{tpu_custom_call.1} parent=1 // pred_fallthru
      _
    // Predicated region
    $region22: #{tpu_custom_call.1} parent=1 // pred_check
      _
    $region23: #{tpu_custom_call.1} parent=1 // pred_check_branch
      %52 = sbr.rel (0) target = $region25
    $region24: #{tpu_custom_call.1} parent=1 // pred_region
      %53 = dma.done [#allocation3], 768
    $region25: #{tpu_custom_call.1} parent=1 // pred_fallthru
      _
    // Predicated region
    $region26: #{tpu_custom_call.1} parent=1 // pred_check
      _
    $region27: #{tpu_custom_call.1} parent=1 // pred_check_branch
      %55 = sbr.rel (0) target = $region29
    $region28: #{tpu_custom_call.1} parent=1 // pred_region
      %56 = dma.done [#allocation6], 6144
    $region29: #{tpu_custom_call.1} parent=1 // pred_fallthru
      _
    // Predicated region
    $region30: #{tpu_custom_call.1} parent=1 // pred_check
      _
    $region31: #{tpu_custom_call.1} parent=1 // pred_check_branch
      %58 = sbr.rel (0) target = $region33
    $region32: #{tpu_custom_call.1} parent=1 // pred_region
      %59 = dma.done [#allocation6], 1024
    $region33: #{tpu_custom_call.1} parent=1 // pred_fallthru
      _
    %v61 = vld [vmem:[#allocation2] sm:$0xff]
    %v62 = vld [vmem:[#allocation2 + $0x8] sm:$0xff]
    %v63 = vld [vmem:[#allocation2 + $0x10] sm:$0xff]
    %v64 = vld [vmem:[#allocation2 + $0x18] sm:$0xff]
    %v65 = vld [vmem:[#allocation2 + $0x20] sm:$0xff]
    %v66 = vld [vmem:[#allocation2 + $0x28] sm:$0xff]
    %v67 = vmax.f32 %v61, 1e-06
    %v68 = vmax.f32 %v62, 1e-06
    %v69 = vmax.f32 %v63, 1e-06
    %v70 = vmax.f32 %v64, 1e-06
    %v71 = vmax.f32 %v65, 1e-06
    %v72 = vmax.f32 %v66, 1e-06
    %v73 = vmin.f32 %v67, 0.999999
    %v74 = vmin.f32 %v68, 0.999999
    %v75 = vmin.f32 %v69, 0.999999
    %v76 = vmin.f32 %v70, 0.999999
    %v77 = vmin.f32 %v71, 0.999999
    %v78 = vmin.f32 %v72, 0.999999
    %v79 = vlog2.pop %v73
    %v80 = vmul.f32 %v79, 0.6931472
    %v81 = vlog2.pop %v74
    %v82 = vmul.f32 %v81, 0.6931472
    %v83 = vlog2.pop %v75
    %v84 = vmul.f32 %v83, 0.6931472
    %v85 = vlog2.pop %v76
    %v86 = vmul.f32 %v85, 0.6931472
    %v87 = vlog2.pop %v77
    %v88 = vmul.f32 %v87, 0.6931472
    %v89 = vlog2.pop %v78
    %v90 = vmul.f32 %v89, 0.6931472
    %v91 = vsub.f32 0.0, %v73
    %v92 = vsub.f32 0.0, %v74
    %v93 = vsub.f32 0.0, %v75
    %v94 = vsub.f32 0.0, %v76
    %v95 = vsub.f32 0.0, %v77
    %v96 = vsub.f32 0.0, %v78
    %v97 = vadd.f32 %v91, 1.0
    %v98 = vlog2.pop %v97
    %v99 = vmul.f32 %v98, 0.6931472
    %v100 = vmul.f32 -0.5, %v91
    %v101 = vadd.f32 %v100, 1.0
    %v102 = vmul.f32 %v101, %v91
    %v103 = vand.u32 2147483647, %v91
    %vm104 = vcmp.lt.f32.partialorder %v103, 0.0004427343
    %v105 = vsel %vm104, %v102, %v99
    %v106 = vadd.f32 %v92, 1.0
    %v107 = vlog2.pop %v106
    %v108 = vmul.f32 %v107, 0.6931472
    %v109 = vmul.f32 -0.5, %v92
    %v110 = vadd.f32 %v109, 1.0
    %v111 = vmul.f32 %v110, %v92
    %v112 = vand.u32 2147483647, %v92
    %vm113 = vcmp.lt.f32.partialorder %v112, 0.0004427343
    %v114 = vsel %vm113, %v111, %v108
    %v115 = vadd.f32 %v93, 1.0
    %v116 = vlog2.pop %v115
    %v117 = vmul.f32 %v116, 0.6931472
    %v118 = vmul.f32 -0.5, %v93
    %v119 = vadd.f32 %v118, 1.0
    %v120 = vmul.f32 %v119, %v93
    %v121 = vand.u32 2147483647, %v93
    %vm122 = vcmp.lt.f32.partialorder %v121, 0.0004427343
    %v123 = vsel %vm122, %v120, %v117
    %v124 = vadd.f32 %v94, 1.0
    %v125 = vlog2.pop %v124
    %v126 = vmul.f32 %v125, 0.6931472
    %v127 = vmul.f32 -0.5, %v94
    %v128 = vadd.f32 %v127, 1.0
    %v129 = vmul.f32 %v128, %v94
    %v130 = vand.u32 2147483647, %v94
    %vm131 = vcmp.lt.f32.partialorder %v130, 0.0004427343
    %v132 = vsel %vm131, %v129, %v126
    %v133 = vadd.f32 %v95, 1.0
    %v134 = vlog2.pop %v133
    %v135 = vmul.f32 %v134, 0.6931472
    %v136 = vmul.f32 -0.5, %v95
    %v137 = vadd.f32 %v136, 1.0
    %v138 = vmul.f32 %v137, %v95
    %v139 = vand.u32 2147483647, %v95
    %vm140 = vcmp.lt.f32.partialorder %v139, 0.0004427343
    %v141 = vsel %vm140, %v138, %v135
    %v142 = vadd.f32 %v96, 1.0
    %v143 = vlog2.pop %v142
    %v144 = vmul.f32 %v143, 0.6931472
    %v145 = vmul.f32 -0.5, %v96
    %v146 = vadd.f32 %v145, 1.0
    %v147 = vmul.f32 %v146, %v96
    %v148 = vand.u32 2147483647, %v96
    %vm149 = vcmp.lt.f32.partialorder %v148, 0.0004427343
    %v150 = vsel %vm149, %v147, %v144
    %v151 = vsub.f32 %v80, %v105
    %v152 = vsub.f32 %v82, %v114
    %v153 = vsub.f32 %v84, %v123
    %v154 = vsub.f32 %v86, %v132
    %v155 = vsub.f32 %v88, %v141
    %v156 = vsub.f32 %v90, %v150
    %v157 = vpack.c.bf16 %v151, %v151
    %v158 = vpack.c.bf16 %v152, %v152
    %v159 = vpack.c.bf16 %v153, %v153
    %v160 = vpack.c.bf16 %v154, %v154
    %v161 = vpack.c.bf16 %v155, %v155
    %v162 = vpack.c.bf16 %v156, %v156
    %v163 = vld [vmem:[#allocation5] sm:$0xf]
    %v164 = vld [vmem:[#allocation5 + $0x4] sm:$0xf]
    %v165 = vld [vmem:[#allocation5 + $0x8] sm:$0xf]
    %v166 = vld [vmem:[#allocation5 + $0xc] sm:$0xf]
    %v167 = vld [vmem:[#allocation5 + $0x10] sm:$0xf]
    %v168 = vld [vmem:[#allocation5 + $0x14] sm:$0xf]
    %v169 = vld [vmem:[#allocation5 + $0x18] sm:$0xf]
    %v170 = vld [vmem:[#allocation5 + $0x1c] sm:$0xf]
    %v171 = vld [vmem:[#allocation5 + $0x20] sm:$0xf]
    %v172 = vld [vmem:[#allocation5 + $0x24] sm:$0xf]
    %v173 = vld [vmem:[#allocation5 + $0x28] sm:$0xf]
    %v174 = vld [vmem:[#allocation5 + $0x2c] sm:$0xf]
    %v175 = vld [vmem:[#allocation5 + $0x30] sm:$0xf]
    %v176 = vld [vmem:[#allocation5 + $0x34] sm:$0xf]
    %v177 = vld [vmem:[#allocation5 + $0x38] sm:$0xf]
    %v178 = vld [vmem:[#allocation5 + $0x3c] sm:$0xf]
    %v179 = vld [vmem:[#allocation5 + $0x40] sm:$0xf]
    %v180 = vld [vmem:[#allocation5 + $0x44] sm:$0xf]
    %v181 = vld [vmem:[#allocation5 + $0x48] sm:$0xf]
    %v182 = vld [vmem:[#allocation5 + $0x4c] sm:$0xf]
    %v183 = vld [vmem:[#allocation5 + $0x50] sm:$0xf]
    %v184 = vld [vmem:[#allocation5 + $0x54] sm:$0xf]
    %v185 = vld [vmem:[#allocation5 + $0x58] sm:$0xf]
    %v186 = vld [vmem:[#allocation5 + $0x5c] sm:$0xf]
    %v187 = vld [vmem:[#allocation5 + $0x60] sm:$0xf]
    %v188 = vld [vmem:[#allocation5 + $0x64] sm:$0xf]
    %v189 = vld [vmem:[#allocation5 + $0x68] sm:$0xf]
    %v190 = vld [vmem:[#allocation5 + $0x6c] sm:$0xf]
    %v191 = vld [vmem:[#allocation5 + $0x70] sm:$0xf]
    %v192 = vld [vmem:[#allocation5 + $0x74] sm:$0xf]
    %v193 = vld [vmem:[#allocation5 + $0x78] sm:$0xf]
    %v194 = vld [vmem:[#allocation5 + $0x7c] sm:$0xf]
    %v195 = vld [vmem:[#allocation5 + $0x80] sm:$0xf]
    %v196 = vld [vmem:[#allocation5 + $0x84] sm:$0xf]
    %v197 = vld [vmem:[#allocation5 + $0x88] sm:$0xf]
    %v198 = vld [vmem:[#allocation5 + $0x8c] sm:$0xf]
    %v199 = vld [vmem:[#allocation5 + $0x90] sm:$0xf]
    %v200 = vld [vmem:[#allocation5 + $0x94] sm:$0xf]
    %v201 = vld [vmem:[#allocation5 + $0x98] sm:$0xf]
    %v202 = vld [vmem:[#allocation5 + $0x9c] sm:$0xf]
    %v203 = vld [vmem:[#allocation5 + $0xa0] sm:$0xf]
    %v204 = vld [vmem:[#allocation5 + $0xa4] sm:$0xf]
    %v205 = vld [vmem:[#allocation5 + $0xa8] sm:$0xf]
    %v206 = vld [vmem:[#allocation5 + $0xac] sm:$0xf]
    %v207 = vld [vmem:[#allocation5 + $0xb0] sm:$0xf]
    %v208 = vld [vmem:[#allocation5 + $0xb4] sm:$0xf]
    %v209 = vld [vmem:[#allocation5 + $0xb8] sm:$0xf]
    %v210 = vld [vmem:[#allocation5 + $0xbc] sm:$0xf]
    %v211 = vld [vmem:[#allocation5 + $0xc0] sm:$0xf]
    %v212 = vld [vmem:[#allocation5 + $0xc4] sm:$0xf]
    %v213 = vld [vmem:[#allocation5 + $0xc8] sm:$0xf]
    %v214 = vld [vmem:[#allocation5 + $0xcc] sm:$0xf]
    %v215 = vld [vmem:[#allocation5 + $0xd0] sm:$0xf]
    %v216 = vld [vmem:[#allocation5 + $0xd4] sm:$0xf]
    %v217 = vld [vmem:[#allocation5 + $0xd8] sm:$0xf]
    %v218 = vld [vmem:[#allocation5 + $0xdc] sm:$0xf]
    %v219 = vld [vmem:[#allocation5 + $0xe0] sm:$0xf]
    %v220 = vld [vmem:[#allocation5 + $0xe4] sm:$0xf]
    %v221 = vld [vmem:[#allocation5 + $0xe8] sm:$0xf]
    %v222 = vld [vmem:[#allocation5 + $0xec] sm:$0xf]
    %v223 = vld [vmem:[#allocation5 + $0xf0] sm:$0xf]
    %v224 = vld [vmem:[#allocation5 + $0xf4] sm:$0xf]
    %v225 = vld [vmem:[#allocation5 + $0xf8] sm:$0xf]
    %v226 = vld [vmem:[#allocation5 + $0xfc] sm:$0xf]
    %v227 = vld [vmem:[#allocation5 + $0x100] sm:$0xf]
    %v228 = vld [vmem:[#allocation5 + $0x104] sm:$0xf]
    %v229 = vld [vmem:[#allocation5 + $0x108] sm:$0xf]
    %v230 = vld [vmem:[#allocation5 + $0x10c] sm:$0xf]
    %v231 = vld [vmem:[#allocation5 + $0x110] sm:$0xf]
    %v232 = vld [vmem:[#allocation5 + $0x114] sm:$0xf]
    %v233 = vld [vmem:[#allocation5 + $0x118] sm:$0xf]
    %v234 = vld [vmem:[#allocation5 + $0x11c] sm:$0xf]
    %v235 = vld [vmem:[#allocation5 + $0x120] sm:$0xf]
    %v236 = vld [vmem:[#allocation5 + $0x124] sm:$0xf]
    %v237 = vld [vmem:[#allocation5 + $0x128] sm:$0xf]
    %v238 = vld [vmem:[#allocation5 + $0x12c] sm:$0xf]
    %v239 = vld [vmem:[#allocation5 + $0x130] sm:$0xf]
    %v240 = vld [vmem:[#allocation5 + $0x134] sm:$0xf]
    %v241 = vld [vmem:[#allocation5 + $0x138] sm:$0xf]
    %v242 = vld [vmem:[#allocation5 + $0x13c] sm:$0xf]
    %v243 = vld [vmem:[#allocation5 + $0x140] sm:$0xf]
    %v244 = vld [vmem:[#allocation5 + $0x144] sm:$0xf]
    %v245 = vld [vmem:[#allocation5 + $0x148] sm:$0xf]
    %v246 = vld [vmem:[#allocation5 + $0x14c] sm:$0xf]
    %v247 = vld [vmem:[#allocation5 + $0x150] sm:$0xf]
    %v248 = vld [vmem:[#allocation5 + $0x154] sm:$0xf]
    %v249 = vld [vmem:[#allocation5 + $0x158] sm:$0xf]
    %v250 = vld [vmem:[#allocation5 + $0x15c] sm:$0xf]
    %v251 = vld [vmem:[#allocation5 + $0x160] sm:$0xf]
    %v252 = vld [vmem:[#allocation5 + $0x164] sm:$0xf]
    %v253 = vld [vmem:[#allocation5 + $0x168] sm:$0xf]
    %v254 = vld [vmem:[#allocation5 + $0x16c] sm:$0xf]
    %v255 = vld [vmem:[#allocation5 + $0x170] sm:$0xf]
    %v256 = vld [vmem:[#allocation5 + $0x174] sm:$0xf]
    %v257 = vld [vmem:[#allocation5 + $0x178] sm:$0xf]
    %v258 = vld [vmem:[#allocation5 + $0x17c] sm:$0xf]
    %v259 = vld [vmem:[%s2] sm:$0x1]
    %v261 = vlaneseq
    %v262 = vshrl.u32 %v261, 7
    %v263 = vsub.s32 0, %v262
    %v264 = vrot.slane %v259, %v263
    %v362 = vunpack.c.l.b16 %v163
    %v363 = vunpack.c.l.b16 %v164
    %v364 = vunpack.c.l.b16 %v165
    %v365 = vunpack.c.l.b16 %v166
    %v366 = vunpack.c.l.b16 %v167
    %v367 = vunpack.c.l.b16 %v168
    %v368 = vunpack.c.l.b16 %v169
    %v369 = vunpack.c.l.b16 %v170
    %v370 = vunpack.c.l.b16 %v171
    %v371 = vunpack.c.l.b16 %v172
    %v372 = vunpack.c.l.b16 %v173
    %v373 = vunpack.c.l.b16 %v174
    %v374 = vunpack.c.l.b16 %v175
    %v375 = vunpack.c.l.b16 %v176
    %v376 = vunpack.c.l.b16 %v177
    %v377 = vunpack.c.l.b16 %v178
    %v378 = vunpack.c.l.b16 %v179
    %v379 = vunpack.c.l.b16 %v180
    %v380 = vunpack.c.l.b16 %v181
    %v381 = vunpack.c.l.b16 %v182
    %v382 = vunpack.c.l.b16 %v183
    %v383 = vunpack.c.l.b16 %v184
    %v384 = vunpack.c.l.b16 %v185
    %v385 = vunpack.c.l.b16 %v186
    %v386 = vunpack.c.l.b16 %v187
    %v387 = vunpack.c.l.b16 %v188
    %v388 = vunpack.c.l.b16 %v189
    %v389 = vunpack.c.l.b16 %v190
    %v390 = vunpack.c.l.b16 %v191
    %v391 = vunpack.c.l.b16 %v192
    %v392 = vunpack.c.l.b16 %v193
    %v393 = vunpack.c.l.b16 %v194
    %v394 = vunpack.c.l.b16 %v195
    %v395 = vunpack.c.l.b16 %v196
    %v396 = vunpack.c.l.b16 %v197
    %v397 = vunpack.c.l.b16 %v198
    %v398 = vunpack.c.l.b16 %v199
    %v399 = vunpack.c.l.b16 %v200
    %v400 = vunpack.c.l.b16 %v201
    %v401 = vunpack.c.l.b16 %v202
    %v402 = vunpack.c.l.b16 %v203
    %v403 = vunpack.c.l.b16 %v204
    %v404 = vunpack.c.l.b16 %v205
    %v405 = vunpack.c.l.b16 %v206
    %v406 = vunpack.c.l.b16 %v207
    %v407 = vunpack.c.l.b16 %v208
    %v408 = vunpack.c.l.b16 %v209
    %v409 = vunpack.c.l.b16 %v210
    %v410 = vunpack.c.l.b16 %v211
    %v411 = vunpack.c.l.b16 %v212
    %v412 = vunpack.c.l.b16 %v213
    %v413 = vunpack.c.l.b16 %v214
    %v414 = vunpack.c.l.b16 %v215
    %v415 = vunpack.c.l.b16 %v216
    %v416 = vunpack.c.l.b16 %v217
    %v417 = vunpack.c.l.b16 %v218
    %v418 = vunpack.c.l.b16 %v219
    %v419 = vunpack.c.l.b16 %v220
    %v420 = vunpack.c.l.b16 %v221
    %v421 = vunpack.c.l.b16 %v222
    %v422 = vunpack.c.l.b16 %v223
    %v423 = vunpack.c.l.b16 %v224
    %v424 = vunpack.c.l.b16 %v225
    %v425 = vunpack.c.l.b16 %v226
    %v426 = vunpack.c.l.b16 %v227
    %v427 = vunpack.c.l.b16 %v228
    %v428 = vunpack.c.l.b16 %v229
    %v429 = vunpack.c.l.b16 %v230
    %v430 = vunpack.c.l.b16 %v231
    %v431 = vunpack.c.l.b16 %v232
    %v432 = vunpack.c.l.b16 %v233
    %v433 = vunpack.c.l.b16 %v234
    %v434 = vunpack.c.l.b16 %v235
    %v435 = vunpack.c.l.b16 %v236
    %v436 = vunpack.c.l.b16 %v237
    %v437 = vunpack.c.l.b16 %v238
    %v438 = vunpack.c.l.b16 %v239
    %v439 = vunpack.c.l.b16 %v240
    %v440 = vunpack.c.l.b16 %v241
    %v441 = vunpack.c.l.b16 %v242
    %v442 = vunpack.c.l.b16 %v243
    %v443 = vunpack.c.l.b16 %v244
    %v444 = vunpack.c.l.b16 %v245
    %v445 = vunpack.c.l.b16 %v246
    %v446 = vunpack.c.l.b16 %v247
    %v447 = vunpack.c.l.b16 %v248
    %v448 = vunpack.c.l.b16 %v249
    %v449 = vunpack.c.l.b16 %v250
    %v450 = vunpack.c.l.b16 %v251
    %v451 = vunpack.c.l.b16 %v252
    %v452 = vunpack.c.l.b16 %v253
    %v453 = vunpack.c.l.b16 %v254
    %v454 = vunpack.c.l.b16 %v255
    %v455 = vunpack.c.l.b16 %v256
    %v456 = vunpack.c.l.b16 %v257
    %v457 = vunpack.c.l.b16 %v258
    %v458 = vpack.c.b16 %v363, %v362
    %v459 = vpack.c.b16 %v365, %v364
    %v460 = vpack.c.b16 %v367, %v366
    %v461 = vpack.c.b16 %v369, %v368
    %v462 = vpack.c.b16 %v371, %v370
    %v463 = vpack.c.b16 %v373, %v372
    %v464 = vpack.c.b16 %v375, %v374
    %v465 = vpack.c.b16 %v377, %v376
    %v466 = vpack.c.b16 %v379, %v378
    %v467 = vpack.c.b16 %v381, %v380
    %v468 = vpack.c.b16 %v383, %v382
    %v469 = vpack.c.b16 %v385, %v384
    %v470 = vpack.c.b16 %v387, %v386
    %v471 = vpack.c.b16 %v389, %v388
    %v472 = vpack.c.b16 %v391, %v390
    %v473 = vpack.c.b16 %v393, %v392
    %v474 = vpack.c.b16 %v395, %v394
    %v475 = vpack.c.b16 %v397, %v396
    %v476 = vpack.c.b16 %v399, %v398
    %v477 = vpack.c.b16 %v401, %v400
    %v478 = vpack.c.b16 %v403, %v402
    %v479 = vpack.c.b16 %v405, %v404
    %v480 = vpack.c.b16 %v407, %v406
    %v481 = vpack.c.b16 %v409, %v408
    %v482 = vpack.c.b16 %v411, %v410
    %v483 = vpack.c.b16 %v413, %v412
    %v484 = vpack.c.b16 %v415, %v414
    %v485 = vpack.c.b16 %v417, %v416
    %v486 = vpack.c.b16 %v419, %v418
    %v487 = vpack.c.b16 %v421, %v420
    %v488 = vpack.c.b16 %v423, %v422
    %v489 = vpack.c.b16 %v425, %v424
    %v490 = vpack.c.b16 %v427, %v426
    %v491 = vpack.c.b16 %v429, %v428
    %v492 = vpack.c.b16 %v431, %v430
    %v493 = vpack.c.b16 %v433, %v432
    %v494 = vpack.c.b16 %v435, %v434
    %v495 = vpack.c.b16 %v437, %v436
    %v496 = vpack.c.b16 %v439, %v438
    %v497 = vpack.c.b16 %v441, %v440
    %v498 = vpack.c.b16 %v443, %v442
    %v499 = vpack.c.b16 %v445, %v444
    %v500 = vpack.c.b16 %v447, %v446
    %v501 = vpack.c.b16 %v449, %v448
    %v502 = vpack.c.b16 %v451, %v450
    %v503 = vpack.c.b16 %v453, %v452
    %v504 = vpack.c.b16 %v455, %v454
    %v505 = vpack.c.b16 %v457, %v456
    %554 = vmatprep.subr.bf16.mxu0 0
    %555 = vmatpush1.bf16.msra.mxu0 %v465
    %556 = vmatprep.subr.bf16.mxu0 0
    %557 = vmatpush1.bf16.msra.mxu0 %v464
    %558 = vmatprep.subr.bf16.mxu0 0
    %559 = vmatpush1.bf16.msra.mxu0 %v463
    %560 = vmatprep.subr.bf16.mxu0 0
    %561 = vmatpush1.bf16.msra.mxu0 %v462
    %562 = vmatprep.subr.bf16.mxu0 0
    %563 = vmatpush1.bf16.msra.mxu0 %v461
    %564 = vmatprep.subr.bf16.mxu0 0
    %565 = vmatpush1.bf16.msra.mxu0 %v460
    %566 = vmatprep.subr.bf16.mxu0 0
    %567 = vmatpush1.bf16.msra.mxu0 %v459
    %568 = vmatprep.subr.bf16.mxu0 0
    %569 = vmatpush1.bf16.msra.mxu0 %v458
    %570 = vmatprep.subr.bf16.mxu0 0
    %571 = vmatpush2.bf16.msra.mxu0 %v473
    %572 = vmatprep.subr.bf16.mxu0 0
    %573 = vmatpush2.bf16.msra.mxu0 %v472
    %574 = vmatprep.subr.bf16.mxu0 0
    %575 = vmatpush2.bf16.msra.mxu0 %v471
    %576 = vmatprep.subr.bf16.mxu0 0
    %577 = vmatpush2.bf16.msra.mxu0 %v470
    %578 = vmatprep.subr.bf16.mxu0 0
    %579 = vmatpush2.bf16.msra.mxu0 %v469
    %580 = vmatprep.subr.bf16.mxu0 0
    %581 = vmatpush2.bf16.msra.mxu0 %v468
    %582 = vmatprep.subr.bf16.mxu0 0
    %583 = vmatpush2.bf16.msra.mxu0 %v467
    %584 = vmatprep.subr.bf16.mxu0 0
    %585 = vmatpush2.bf16.msra.mxu0 %v466
    %586 = vmatprep.mubr.bf16.mxu0 %v158
    %587 = vmatmul.mubr.bf16.gmra.mxu0 %v157
    %v588 = vpop.f32.mrf.mxu0
    %v589 = vadd.f32 %v264, %v588
    %v590 = vpop.f32.mrf.mxu0
    %v591 = vpop.f32.mrf.mxu0
    %v592 = vpop.f32.mrf.mxu0
    %593 = vdwg.mxu0
    %594 = vmatprep.subr.bf16.mxu0 0
    %595 = vmatpush1.bf16.msra.mxu0 %v481
    %596 = vmatprep.subr.bf16.mxu0 0
    %597 = vmatpush1.bf16.msra.mxu0 %v480
    %598 = vmatprep.subr.bf16.mxu0 0
    %599 = vmatpush1.bf16.msra.mxu0 %v479
    %600 = vmatprep.subr.bf16.mxu0 0
    %601 = vmatpush1.bf16.msra.mxu0 %v478
    %602 = vmatprep.subr.bf16.mxu0 0
    %603 = vmatpush1.bf16.msra.mxu0 %v477
    %604 = vmatprep.subr.bf16.mxu0 0
    %605 = vmatpush1.bf16.msra.mxu0 %v476
    %606 = vmatprep.subr.bf16.mxu0 0
    %607 = vmatpush1.bf16.msra.mxu0 %v475
    %608 = vmatprep.subr.bf16.mxu0 0
    %609 = vmatpush1.bf16.msra.mxu0 %v474
    %610 = vmatprep.subr.bf16.mxu0 0
    %611 = vmatpush2.bf16.msra.mxu0 %v489
    %612 = vmatprep.subr.bf16.mxu0 0
    %613 = vmatpush2.bf16.msra.mxu0 %v488
    %614 = vmatprep.subr.bf16.mxu0 0
    %615 = vmatpush2.bf16.msra.mxu0 %v487
    %616 = vmatprep.subr.bf16.mxu0 0
    %617 = vmatpush2.bf16.msra.mxu0 %v486
    %618 = vmatprep.subr.bf16.mxu0 0
    %619 = vmatpush2.bf16.msra.mxu0 %v485
    %620 = vmatprep.subr.bf16.mxu0 0
    %621 = vmatpush2.bf16.msra.mxu0 %v484
    %622 = vmatprep.subr.bf16.mxu0 0
    %623 = vmatpush2.bf16.msra.mxu0 %v483
    %624 = vmatprep.subr.bf16.mxu0 0
    %625 = vmatpush2.bf16.msra.mxu0 %v482
    %626 = vmatprep.mubr.bf16.mxu0 %v160
    %627 = vmatmul.mubr.bf16.gmra.mxu0 %v159
    %v628 = vpop.f32.mrf.mxu0
    %v629 = vadd.f32 %v589, %v628
    %v630 = vpop.f32.mrf.mxu0
    %v631 = vpop.f32.mrf.mxu0
    %v632 = vpop.f32.mrf.mxu0
    %633 = vdwg.mxu0
    %634 = vmatprep.subr.bf16.mxu0 0
    %635 = vmatpush1.bf16.msra.mxu0 %v497
    %636 = vmatprep.subr.bf16.mxu0 0
    %637 = vmatpush1.bf16.msra.mxu0 %v496
    %638 = vmatprep.subr.bf16.mxu0 0
    %639 = vmatpush1.bf16.msra.mxu0 %v495
    %640 = vmatprep.subr.bf16.mxu0 0
    %641 = vmatpush1.bf16.msra.mxu0 %v494
    %642 = vmatprep.subr.bf16.mxu0 0
    %643 = vmatpush1.bf16.msra.mxu0 %v493
    %644 = vmatprep.subr.bf16.mxu0 0
    %645 = vmatpush1.bf16.msra.mxu0 %v492
    %646 = vmatprep.subr.bf16.mxu0 0
    %647 = vmatpush1.bf16.msra.mxu0 %v491
    %648 = vmatprep.subr.bf16.mxu0 0
    %649 = vmatpush1.bf16.msra.mxu0 %v490
    %650 = vmatprep.subr.bf16.mxu0 0
    %651 = vmatpush2.bf16.msra.mxu0 %v505
    %652 = vmatprep.subr.bf16.mxu0 0
    %653 = vmatpush2.bf16.msra.mxu0 %v504
    %654 = vmatprep.subr.bf16.mxu0 0
    %655 = vmatpush2.bf16.msra.mxu0 %v503
    %656 = vmatprep.subr.bf16.mxu0 0
    %657 = vmatpush2.bf16.msra.mxu0 %v502
    %658 = vmatprep.subr.bf16.mxu0 0
    %659 = vmatpush2.bf16.msra.mxu0 %v501
    %660 = vmatprep.subr.bf16.mxu0 0
    %661 = vmatpush2.bf16.msra.mxu0 %v500
    %662 = vmatprep.subr.bf16.mxu0 0
    %663 = vmatpush2.bf16.msra.mxu0 %v499
    %664 = vmatprep.subr.bf16.mxu0 0
    %665 = vmatpush2.bf16.msra.mxu0 %v498
    %666 = vmatprep.mubr.bf16.mxu0 %v162
    %667 = vmatmul.mubr.bf16.gmra.mxu0 %v161
    %v668 = vpop.f32.mrf.mxu0
    %v669 = vadd.f32 %v629, %v668
    %v670 = vpop.f32.mrf.mxu0
    %v671 = vpop.f32.mrf.mxu0
    %v672 = vpop.f32.mrf.mxu0
    %673 = vdwg.mxu0
    %v674 = vmax.f32 %v669, 0.0
    %v675 = vpack.c.bf16 %v674, %v674
    %v676 = vld [vmem:[#allocation7] sm:$0xf]
    %v677 = vld [vmem:[#allocation7 + $0x4] sm:$0xf]
    %v678 = vld [vmem:[#allocation7 + $0x8] sm:$0xf]
    %v679 = vld [vmem:[#allocation7 + $0xc] sm:$0xf]
    %v680 = vld [vmem:[#allocation7 + $0x10] sm:$0xf]
    %v681 = vld [vmem:[#allocation7 + $0x14] sm:$0xf]
    %v682 = vld [vmem:[#allocation7 + $0x18] sm:$0xf]
    %v683 = vld [vmem:[#allocation7 + $0x1c] sm:$0xf]
    %v684 = vld [vmem:[#allocation7 + $0x20] sm:$0xf]
    %v685 = vld [vmem:[#allocation7 + $0x24] sm:$0xf]
    %v686 = vld [vmem:[#allocation7 + $0x28] sm:$0xf]
    %v687 = vld [vmem:[#allocation7 + $0x2c] sm:$0xf]
    %v688 = vld [vmem:[#allocation7 + $0x30] sm:$0xf]
    %v689 = vld [vmem:[#allocation7 + $0x34] sm:$0xf]
    %v690 = vld [vmem:[#allocation7 + $0x38] sm:$0xf]
    %v691 = vld [vmem:[#allocation7 + $0x3c] sm:$0xf]
    %v692 = vld [vmem:[%s4] sm:$0x1]
    %v694 = vlaneseq
    %v695 = vshrl.u32 %v694, 7
    %v696 = vsub.s32 0, %v695
    %v697 = vrot.slane %v692, %v696
    %v715 = vunpack.c.l.b16 %v676
    %v716 = vunpack.c.l.b16 %v677
    %v717 = vunpack.c.l.b16 %v678
    %v718 = vunpack.c.l.b16 %v679
    %v719 = vunpack.c.l.b16 %v680
    %v720 = vunpack.c.l.b16 %v681
    %v721 = vunpack.c.l.b16 %v682
    %v722 = vunpack.c.l.b16 %v683
    %v723 = vunpack.c.l.b16 %v684
    %v724 = vunpack.c.l.b16 %v685
    %v725 = vunpack.c.l.b16 %v686
    %v726 = vunpack.c.l.b16 %v687
    %v727 = vunpack.c.l.b16 %v688
    %v728 = vunpack.c.l.b16 %v689
    %v729 = vunpack.c.l.b16 %v690
    %v730 = vunpack.c.l.b16 %v691
    %v731 = vpack.c.b16 %v716, %v715
    %v732 = vpack.c.b16 %v718, %v717
    %v733 = vpack.c.b16 %v720, %v719
    %v734 = vpack.c.b16 %v722, %v721
    %v735 = vpack.c.b16 %v724, %v723
    %v736 = vpack.c.b16 %v726, %v725
    %v737 = vpack.c.b16 %v728, %v727
    %v738 = vpack.c.b16 %v730, %v729
    %747 = vmatprep.subr.bf16.mxu0 0
    %748 = vmatpush1.bf16.msra.mxu0 %v738
    %749 = vmatprep.subr.bf16.mxu0 0
    %750 = vmatpush1.bf16.msra.mxu0 %v737
    %751 = vmatprep.subr.bf16.mxu0 0
    %752 = vmatpush1.bf16.msra.mxu0 %v736
    %753 = vmatprep.subr.bf16.mxu0 0
    %754 = vmatpush1.bf16.msra.mxu0 %v735
    %755 = vmatprep.subr.bf16.mxu0 0
    %756 = vmatpush1.bf16.msra.mxu0 %v734
    %757 = vmatprep.subr.bf16.mxu0 0
    %758 = vmatpush1.bf16.msra.mxu0 %v733
    %759 = vmatprep.subr.bf16.mxu0 0
    %760 = vmatpush1.bf16.msra.mxu0 %v732
    %761 = vmatprep.subr.bf16.mxu0 0
    %762 = vmatpush1.bf16.msra.mxu0 %v731
    %763 = vmatprep.subr.bf16.mxu0 0
    %764 = vmatpush2.bf16.msra.mxu0 0
    %765 = vmatprep.subr.bf16.mxu0 0
    %766 = vmatpush2.bf16.msra.mxu0 0
    %767 = vmatprep.subr.bf16.mxu0 0
    %768 = vmatpush2.bf16.msra.mxu0 0
    %769 = vmatprep.subr.bf16.mxu0 0
    %770 = vmatpush2.bf16.msra.mxu0 0
    %771 = vmatprep.subr.bf16.mxu0 0
    %772 = vmatpush2.bf16.msra.mxu0 0
    %773 = vmatprep.subr.bf16.mxu0 0
    %774 = vmatpush2.bf16.msra.mxu0 0
    %775 = vmatprep.subr.bf16.mxu0 0
    %776 = vmatpush2.bf16.msra.mxu0 0
    %777 = vmatprep.subr.bf16.mxu0 0
    %778 = vmatpush2.bf16.msra.mxu0 0
    %779 = vmatprep.mubr.bf16.mxu0 0
    %780 = vmatmul.mubr.bf16.gmra.mxu0 %v675
    %v781 = vpop.f32.mrf.mxu0
    %v782 = vadd.f32 %v697, %v781
    %v783 = vpop.f32.mrf.mxu0
    %v784 = vpop.f32.mrf.mxu0
    %v785 = vpop.f32.mrf.mxu0
    %786 = vdwg.mxu0
    %v787 = vxor.u32 %v782, 2147483648
    %v788 = vmul.f32 %v787, 1.442695
    %v789 = vpow.pop %v788
    %v790 = vadd.f32 %v789, 1.0
    %v791 = vrcp.pop %v790
    %v792 = vmul.f32 1.0, %v791
    %v793 = vpack.c.bf16 %v792, %v792
    %794 = vst [vmem:[#allocation8] sm:$0xf] %v793
    // Predicated region
    $region34: #{tpu_custom_call.1} parent=1 // pred_check
      _
    $region35: #{tpu_custom_call.1} parent=1 // pred_check_branch
      %796 = sbr.rel (0) target = $region37
    $region36: #{tpu_custom_call.1} parent=1 // pred_region
      %s798 = ssub.s32 64, 64
      %799 = vsyncadd [#allocation4], %s798
      %s801 = sshll.u32 [#allocation8], 4
      %s802 = int_to_ptr.vmem [resolvable:$true] %s801
      %804 = dma.vmem_to_hbm [thread:$0]  %s802, 64, %s5, [#allocation4]
    $region37: #{tpu_custom_call.1} parent=1 // pred_fallthru
      _
    // Predicated region
    $region38: #{tpu_custom_call.1} parent=1 // pred_check
      _
    $region39: #{tpu_custom_call.1} parent=1 // pred_check_branch
      %806 = sbr.rel (0) target = $region41
    $region40: #{tpu_custom_call.1} parent=1 // pred_region
      %807 = dma.done [#allocation4], 64
    $region41: #{tpu_custom_call.1} parent=1 // pred_fallthru
      _
    %808 = vsyncpa [#allocation3], 1
    %809 = vsyncpa [#allocation6], 1
    %810 = vsyncpa [#allocation4], 1

</llo_original>
